<compile_context>
chip_gen: v5e
topology: v5e:2x2
jax: 0.10.0
libtpu: 0.0.40
codegen_flags: <defaults>
</compile_context>

<pallas_src>
import jax
import jax.numpy as jnp
from jax import lax
from jax.experimental import pallas as pl
from jax.experimental.pallas import tpu as pltpu


def _round_up(x, m):
    return ((x + m - 1) // m) * m


def _learn_pose_kernel(in_ref, out_ref):
    # in_ref:  (22, Bt) f32 — rows 0..2 = r, 3..5 = t, 6..21 = init_c2w (row-major).
    # out_ref: (16, Bt) f32 — c2w @ init_c2w, flattened row-major.  Batch on lanes.
    rx = in_ref[0:1, :]
    ry = in_ref[1:2, :]
    rz = in_ref[2:3, :]
    tx = in_ref[3:4, :]
    ty = in_ref[4:5, :]
    tz = in_ref[5:6, :]

    # |r|^2 straight from the components; rsqrt on the EUP (no VALU divide).
    n2 = rx * rx + ry * ry + rz * rz
    inv = lax.rsqrt(n2 + 1e-30)          # ~ 1 / |r|
    norm = n2 * inv                      # ~ |r|
    s = jnp.sin(norm) * inv              # sin(|r|) / |r|
    c = (1.0 - jnp.cos(norm)) * inv * inv  # (1 - cos(|r|)) / |r|^2

    sx = s * rx
    sy = s * ry
    sz = s * rz
    cxy = c * rx * ry
    cxz = c * rx * rz
    cyz = c * ry * rz

    # Rodrigues closed form: R = I + s*K + c*(K@K); diagonals reuse n2.
    R00 = 1.0 - c * (n2 - rx * rx)
    R11 = 1.0 - c * (n2 - ry * ry)
    R22 = 1.0 - c * (n2 - rz * rz)
    R01 = cxy - sz
    R02 = cxz + sy
    R10 = cxy + sz
    R12 = cyz - sx
    R20 = cxz - sy
    R21 = cyz + sx

    # init_c2w rows/cols: init[k][j] lives at slab row 6 + 4k + j, shape (1, Bt).
    init_rows = [in_ref[6 + k:7 + k, :] for k in range(16)]

    # out[i][j] = R[i][0]*init[0][j] + R[i][1]*init[1][j] + R[i][2]*init[2][j] + t[i]*init[3][j]
    c2w_rows = [(R00, R01, R02, tx),
                (R10, R11, R12, ty),
                (R20, R21, R22, tz)]
    out_rows = []
    for a0, a1, a2, a3 in c2w_rows:
        for j in range(4):
            b0 = init_rows[0 + j]
            b1 = init_rows[4 + j]
            b2 = init_rows[8 + j]
            b3 = init_rows[12 + j]
            out_rows.append(a0 * b0 + a1 * b1 + a2 * b2 + a3 * b3)
    # Last output row of c2w@init is just init's last row ([0,0,0,1] @ init).
    out_rows += [init_rows[12], init_rows[13], init_rows[14], init_rows[15]]

    # Single lane-dense store of the full (16, Bt) tile.
    out_ref[...] = jnp.concatenate(out_rows, axis=0)


def _ref_forward_single(cam_id, r_all, t_all, init_c2w):
    """Pure-JAX reference mirroring the PyTorch module for one camera."""
    r = r_all[cam_id]
    t = t_all[cam_id]
    K = jnp.array([[0.0, -r[2], r[1]],
                   [r[2], 0.0, -r[0]],
                   [-r[1], r[0], 0.0]], jnp.float32)
    n = jnp.linalg.norm(r) + 1e-15
    R = (jnp.eye(3, dtype=jnp.float32)
         + jnp.sin(n) / n * K
         + (1.0 - jnp.cos(n)) / (n ** 2) * (K @ K))
    c2w = jnp.concatenate([R, t[:, None]], axis=1)
    c2w = jnp.concatenate(
        [c2w, jnp.array([[0.0, 0.0, 0.0, 1.0]], jnp.float32)], axis=0)
    return c2w @ init_c2w[cam_id]


def learn_pose_forward(cam_id, r, t, init_c2w, *,
                       max_block=8192, jnp_batch_threshold=0):
    """LearnPose.forward.

    cam_id: int scalar or (B,) int32 vector of camera ids.
    r, t: (N, 3) float32;  init_c2w: (N, 4, 4) float32.
    Returns (4, 4) for a scalar cam_id, (B, 4, 4) for a vector.

    jnp_batch_threshold: batches of size <= this skip Pallas entirely (launch
    overhead dwarfs the math at tiny B).  Default 0 so the kernel always runs
    in this script; set to ~1024 in production.
    """
    cam_ids = jnp.asarray(cam_id, jnp.int32)
    scalar_input = cam_ids.ndim == 0
    cam_ids = jnp.atleast_1d(cam_ids)
    B = cam_ids.shape[0]

    r = jnp.asarray(r, jnp.float32)
    t = jnp.asarray(t, jnp.float32)
    init_c2w = jnp.asarray(init_c2w, jnp.float32)
    init_flat = init_c2w.reshape(-1, 16)

    if B <= jnp_batch_threshold:
        out = jax.vmap(lambda cid: _ref_forward_single(cid, r, t, init_c2w))(cam_ids)
        return out[0] if scalar_input else out

    # One fused gather of the requested cameras, then channel-major (22, B):
    # batch on the lane axis -> lane-dense DMAs/loads/stores in the kernel.
    table = jnp.concatenate([r, t, init_flat], axis=1)      # (N, 22)
    slab = jnp.take(table, cam_ids, axis=0).T               # (22, B)

    # Lane-aligned batch; one big tile unless B is very large (then the grid
    # axis is "parallel" and shards across the 2 TCs on v7x).
    Bp = _round_up(max(B, 1), 128)
    bt = min(max_block, Bp)
    Bp = _round_up(Bp, bt)
    if Bp != B:
        slab = jnp.pad(slab, ((0, 0), (0, Bp - B)))

    out_flat = pl.pallas_call(
        _learn_pose_kernel,
        out_shape=jax.ShapeDtypeStruct((16, Bp), jnp.float32),
        grid_spec=pltpu.PrefetchScalarGridSpec(
            num_scalar_prefetch=0,
            grid=(Bp // bt,),
            in_specs=[pl.BlockSpec((22, bt), lambda i: (0, i))],
            out_specs=pl.BlockSpec((16, bt), lambda i: (0, i)),
        ),
        compiler_params=pltpu.CompilerParams(
            dimension_semantics=("parallel",)),
        cost_estimate=pl.CostEstimate(
            flops=60 * Bp, transcendentals=3 * Bp, bytes_accessed=152 * Bp),
    )(slab)

    out = out_flat[:, :B].T.reshape(B, 4, 4)
    return out[0] if scalar_input else out


if __name__ == "__main__":
    key = jax.random.PRNGKey(0)
    k1, k2, k3 = jax.random.split(key, 3)

    num_cams = 8
    # The module __init__ uses zeros for r/t (forward would trivially return
    # init_c2w[cam_id]); use small non-zero values so the Rodrigues/trig path
    # is actually exercised.
    r = 0.1 * jax.random.normal(k1, (num_cams, 3), jnp.float32)
    t = jax.random.normal(k2, (num_cams, 3), jnp.float32)
    init_c2w = jax.random.normal(k3, (num_cams, 4, 4), jnp.float32)

    # Batched path (the intended high-throughput usage).
    cam_ids = jnp.array([3, 0, 7, 5, 1], jnp.int32)
    out_b = jax.block_until_ready(learn_pose_forward(cam_ids, r, t, init_c2w))
    ref_b = jnp.stack(
        [_ref_forward_single(int(c), r, t, init_c2w) for c in list(cam_ids)])
    assert out_b.shape == (5, 4, 4) and out_b.dtype == jnp.float32
    assert jnp.allclose(out_b, ref_b, atol=1e-4, rtol=1e-4), (out_b, ref_b)

    # Scalar path (matches the PyTorch module's forward(cam_id) signature).
    out_s = jax.block_until_ready(learn_pose_forward(3, r, t, init_c2w))
    ref_s = _ref_forward_single(3, r, t, init_c2w)
    assert out_s.shape == (4, 4) and out_s.dtype == jnp.float32
    assert jnp.allclose(out_s, ref_s, atol=1e-4, rtol=1e-4), (out_s, ref_s)

    # Multi-tile grid path (exercises padding + >1 grid step with a small tile).
    cam_ids_big = jnp.arange(260, dtype=jnp.int32) % num_cams
    out_g = jax.block_until_ready(
        learn_pose_forward(cam_ids_big, r, t, init_c2w, max_block=128))
    ref_g = jnp.stack(
        [_ref_forward_single(int(c), r, t, init_c2w) for c in list(cam_ids_big)])
    assert out_g.shape == (260, 4, 4)
    assert jnp.allclose(out_g, ref_g, atol=1e-4, rtol=1e-4)

    print("KERNEL_OK")
</pallas_src>

<mosaic_0001>
module attributes {stable_mosaic.version = 11 : i64} {
  func.func @_learn_pose_kernel(%arg0: i32, %arg1: memref<22x128xf32, #tpu.memory_space<vmem>>, %arg2: memref<16x128xf32, #tpu.memory_space<vmem>>) attributes {dimension_semantics = [#tpu.dimension_semantics<parallel>], iteration_bounds = array<i64: 1>, scalar_prefetch = 0 : i64, scratch_operands = 0 : i64, tpu.core_type = #tpu.core_type<tc>, window_params = [{transform_indices = @transform_0, window_bounds = array<i64: 22, 128>}, {transform_indices = @transform_1, window_bounds = array<i64: 16, 128>}]} {
    %c0 = arith.constant 0 : index
    %c0_0 = arith.constant 0 : index
    %0 = vector.load %arg1[%c0, %c0_0] : memref<22x128xf32, #tpu.memory_space<vmem>>, vector<1x128xf32>
    %c1 = arith.constant 1 : index
    %c0_1 = arith.constant 0 : index
    %1 = vector.load %arg1[%c1, %c0_1] : memref<22x128xf32, #tpu.memory_space<vmem>>, vector<1x128xf32>
    %c2 = arith.constant 2 : index
    %c0_2 = arith.constant 0 : index
    %2 = vector.load %arg1[%c2, %c0_2] : memref<22x128xf32, #tpu.memory_space<vmem>>, vector<1x128xf32>
    %c3 = arith.constant 3 : index
    %c0_3 = arith.constant 0 : index
    %3 = vector.load %arg1[%c3, %c0_3] : memref<22x128xf32, #tpu.memory_space<vmem>>, vector<1x128xf32>
    %c4 = arith.constant 4 : index
    %c0_4 = arith.constant 0 : index
    %4 = vector.load %arg1[%c4, %c0_4] : memref<22x128xf32, #tpu.memory_space<vmem>>, vector<1x128xf32>
    %c5 = arith.constant 5 : index
    %c0_5 = arith.constant 0 : index
    %5 = vector.load %arg1[%c5, %c0_5] : memref<22x128xf32, #tpu.memory_space<vmem>>, vector<1x128xf32>
    %6 = arith.mulf %0, %0 : vector<1x128xf32>
    %7 = arith.mulf %1, %1 : vector<1x128xf32>
    %8 = arith.addf %6, %7 : vector<1x128xf32>
    %9 = arith.mulf %2, %2 : vector<1x128xf32>
    %10 = arith.addf %8, %9 : vector<1x128xf32>
    %cst = arith.constant 1.000000e-30 : f32
    %11 = vector.broadcast %cst : f32 to vector<1x128xf32>
    %12 = arith.addf %10, %11 : vector<1x128xf32>
    %13 = math.rsqrt %12 : vector<1x128xf32>
    %14 = arith.mulf %10, %13 : vector<1x128xf32>
    %15 = math.sin %14 : vector<1x128xf32>
    %16 = arith.mulf %15, %13 : vector<1x128xf32>
    %17 = math.cos %14 : vector<1x128xf32>
    %cst_6 = arith.constant 1.000000e+00 : f32
    %18 = vector.broadcast %cst_6 : f32 to vector<1x128xf32>
    %19 = arith.subf %18, %17 : vector<1x128xf32>
    %20 = arith.mulf %19, %13 : vector<1x128xf32>
    %21 = arith.mulf %20, %13 : vector<1x128xf32>
    %22 = arith.mulf %16, %0 : vector<1x128xf32>
    %23 = arith.mulf %16, %1 : vector<1x128xf32>
    %24 = arith.mulf %16, %2 : vector<1x128xf32>
    %25 = arith.mulf %21, %0 : vector<1x128xf32>
    %26 = arith.mulf %25, %1 : vector<1x128xf32>
    %27 = arith.mulf %21, %0 : vector<1x128xf32>
    %28 = arith.mulf %27, %2 : vector<1x128xf32>
    %29 = arith.mulf %21, %1 : vector<1x128xf32>
    %30 = arith.mulf %29, %2 : vector<1x128xf32>
    %31 = arith.mulf %0, %0 : vector<1x128xf32>
    %32 = arith.subf %10, %31 : vector<1x128xf32>
    %33 = arith.mulf %21, %32 : vector<1x128xf32>
    %cst_7 = arith.constant 1.000000e+00 : f32
    %34 = vector.broadcast %cst_7 : f32 to vector<1x128xf32>
    %35 = arith.subf %34, %33 : vector<1x128xf32>
    %36 = arith.mulf %1, %1 : vector<1x128xf32>
    %37 = arith.subf %10, %36 : vector<1x128xf32>
    %38 = arith.mulf %21, %37 : vector<1x128xf32>
    %cst_8 = arith.constant 1.000000e+00 : f32
    %39 = vector.broadcast %cst_8 : f32 to vector<1x128xf32>
    %40 = arith.subf %39, %38 : vector<1x128xf32>
    %41 = arith.mulf %2, %2 : vector<1x128xf32>
    %42 = arith.subf %10, %41 : vector<1x128xf32>
    %43 = arith.mulf %21, %42 : vector<1x128xf32>
    %cst_9 = arith.constant 1.000000e+00 : f32
    %44 = vector.broadcast %cst_9 : f32 to vector<1x128xf32>
    %45 = arith.subf %44, %43 : vector<1x128xf32>
    %46 = arith.subf %26, %24 : vector<1x128xf32>
    %47 = arith.addf %28, %23 : vector<1x128xf32>
    %48 = arith.addf %26, %24 : vector<1x128xf32>
    %49 = arith.subf %30, %22 : vector<1x128xf32>
    %50 = arith.subf %28, %23 : vector<1x128xf32>
    %51 = arith.addf %30, %22 : vector<1x128xf32>
    %c6 = arith.constant 6 : index
    %c0_10 = arith.constant 0 : index
    %52 = vector.load %arg1[%c6, %c0_10] : memref<22x128xf32, #tpu.memory_space<vmem>>, vector<1x128xf32>
    %c7 = arith.constant 7 : index
    %c0_11 = arith.constant 0 : index
    %53 = vector.load %arg1[%c7, %c0_11] : memref<22x128xf32, #tpu.memory_space<vmem>>, vector<1x128xf32>
    %c8 = arith.constant 8 : index
    %c0_12 = arith.constant 0 : index
    %54 = vector.load %arg1[%c8, %c0_12] : memref<22x128xf32, #tpu.memory_space<vmem>>, vector<1x128xf32>
    %c9 = arith.constant 9 : index
    %c0_13 = arith.constant 0 : index
    %55 = vector.load %arg1[%c9, %c0_13] : memref<22x128xf32, #tpu.memory_space<vmem>>, vector<1x128xf32>
    %c10 = arith.constant 10 : index
    %c0_14 = arith.constant 0 : index
    %56 = vector.load %arg1[%c10, %c0_14] : memref<22x128xf32, #tpu.memory_space<vmem>>, vector<1x128xf32>
    %c11 = arith.constant 11 : index
    %c0_15 = arith.constant 0 : index
    %57 = vector.load %arg1[%c11, %c0_15] : memref<22x128xf32, #tpu.memory_space<vmem>>, vector<1x128xf32>
    %c12 = arith.constant 12 : index
    %c0_16 = arith.constant 0 : index
    %58 = vector.load %arg1[%c12, %c0_16] : memref<22x128xf32, #tpu.memory_space<vmem>>, vector<1x128xf32>
    %c13 = arith.constant 13 : index
    %c0_17 = arith.constant 0 : index
    %59 = vector.load %arg1[%c13, %c0_17] : memref<22x128xf32, #tpu.memory_space<vmem>>, vector<1x128xf32>
    %c14 = arith.constant 14 : index
    %c0_18 = arith.constant 0 : index
    %60 = vector.load %arg1[%c14, %c0_18] : memref<22x128xf32, #tpu.memory_space<vmem>>, vector<1x128xf32>
    %c15 = arith.constant 15 : index
    %c0_19 = arith.constant 0 : index
    %61 = vector.load %arg1[%c15, %c0_19] : memref<22x128xf32, #tpu.memory_space<vmem>>, vector<1x128xf32>
    %c16 = arith.constant 16 : index
    %c0_20 = arith.constant 0 : index
    %62 = vector.load %arg1[%c16, %c0_20] : memref<22x128xf32, #tpu.memory_space<vmem>>, vector<1x128xf32>
    %c17 = arith.constant 17 : index
    %c0_21 = arith.constant 0 : index
    %63 = vector.load %arg1[%c17, %c0_21] : memref<22x128xf32, #tpu.memory_space<vmem>>, vector<1x128xf32>
    %c18 = arith.constant 18 : index
    %c0_22 = arith.constant 0 : index
    %64 = vector.load %arg1[%c18, %c0_22] : memref<22x128xf32, #tpu.memory_space<vmem>>, vector<1x128xf32>
    %c19 = arith.constant 19 : index
    %c0_23 = arith.constant 0 : index
    %65 = vector.load %arg1[%c19, %c0_23] : memref<22x128xf32, #tpu.memory_space<vmem>>, vector<1x128xf32>
    %c20 = arith.constant 20 : index
    %c0_24 = arith.constant 0 : index
    %66 = vector.load %arg1[%c20, %c0_24] : memref<22x128xf32, #tpu.memory_space<vmem>>, vector<1x128xf32>
    %c21 = arith.constant 21 : index
    %c0_25 = arith.constant 0 : index
    %67 = vector.load %arg1[%c21, %c0_25] : memref<22x128xf32, #tpu.memory_space<vmem>>, vector<1x128xf32>
    %68 = arith.mulf %35, %52 : vector<1x128xf32>
    %69 = arith.mulf %46, %56 : vector<1x128xf32>
    %70 = arith.addf %68, %69 : vector<1x128xf32>
    %71 = arith.mulf %47, %60 : vector<1x128xf32>
    %72 = arith.addf %70, %71 : vector<1x128xf32>
    %73 = arith.mulf %3, %64 : vector<1x128xf32>
    %74 = arith.addf %72, %73 : vector<1x128xf32>
    %75 = arith.mulf %35, %53 : vector<1x128xf32>
    %76 = arith.mulf %46, %57 : vector<1x128xf32>
    %77 = arith.addf %75, %76 : vector<1x128xf32>
    %78 = arith.mulf %47, %61 : vector<1x128xf32>
    %79 = arith.addf %77, %78 : vector<1x128xf32>
    %80 = arith.mulf %3, %65 : vector<1x128xf32>
    %81 = arith.addf %79, %80 : vector<1x128xf32>
    %82 = arith.mulf %35, %54 : vector<1x128xf32>
    %83 = arith.mulf %46, %58 : vector<1x128xf32>
    %84 = arith.addf %82, %83 : vector<1x128xf32>
    %85 = arith.mulf %47, %62 : vector<1x128xf32>
    %86 = arith.addf %84, %85 : vector<1x128xf32>
    %87 = arith.mulf %3, %66 : vector<1x128xf32>
    %88 = arith.addf %86, %87 : vector<1x128xf32>
    %89 = arith.mulf %35, %55 : vector<1x128xf32>
    %90 = arith.mulf %46, %59 : vector<1x128xf32>
    %91 = arith.addf %89, %90 : vector<1x128xf32>
    %92 = arith.mulf %47, %63 : vector<1x128xf32>
    %93 = arith.addf %91, %92 : vector<1x128xf32>
    %94 = arith.mulf %3, %67 : vector<1x128xf32>
    %95 = arith.addf %93, %94 : vector<1x128xf32>
    %96 = arith.mulf %48, %52 : vector<1x128xf32>
    %97 = arith.mulf %40, %56 : vector<1x128xf32>
    %98 = arith.addf %96, %97 : vector<1x128xf32>
    %99 = arith.mulf %49, %60 : vector<1x128xf32>
    %100 = arith.addf %98, %99 : vector<1x128xf32>
    %101 = arith.mulf %4, %64 : vector<1x128xf32>
    %102 = arith.addf %100, %101 : vector<1x128xf32>
    %103 = arith.mulf %48, %53 : vector<1x128xf32>
    %104 = arith.mulf %40, %57 : vector<1x128xf32>
    %105 = arith.addf %103, %104 : vector<1x128xf32>
    %106 = arith.mulf %49, %61 : vector<1x128xf32>
    %107 = arith.addf %105, %106 : vector<1x128xf32>
    %108 = arith.mulf %4, %65 : vector<1x128xf32>
    %109 = arith.addf %107, %108 : vector<1x128xf32>
    %110 = arith.mulf %48, %54 : vector<1x128xf32>
    %111 = arith.mulf %40, %58 : vector<1x128xf32>
    %112 = arith.addf %110, %111 : vector<1x128xf32>
    %113 = arith.mulf %49, %62 : vector<1x128xf32>
    %114 = arith.addf %112, %113 : vector<1x128xf32>
    %115 = arith.mulf %4, %66 : vector<1x128xf32>
    %116 = arith.addf %114, %115 : vector<1x128xf32>
    %117 = arith.mulf %48, %55 : vector<1x128xf32>
    %118 = arith.mulf %40, %59 : vector<1x128xf32>
    %119 = arith.addf %117, %118 : vector<1x128xf32>
    %120 = arith.mulf %49, %63 : vector<1x128xf32>
    %121 = arith.addf %119, %120 : vector<1x128xf32>
    %122 = arith.mulf %4, %67 : vector<1x128xf32>
    %123 = arith.addf %121, %122 : vector<1x128xf32>
    %124 = arith.mulf %50, %52 : vector<1x128xf32>
    %125 = arith.mulf %51, %56 : vector<1x128xf32>
    %126 = arith.addf %124, %125 : vector<1x128xf32>
    %127 = arith.mulf %45, %60 : vector<1x128xf32>
    %128 = arith.addf %126, %127 : vector<1x128xf32>
    %129 = arith.mulf %5, %64 : vector<1x128xf32>
    %130 = arith.addf %128, %129 : vector<1x128xf32>
    %131 = arith.mulf %50, %53 : vector<1x128xf32>
    %132 = arith.mulf %51, %57 : vector<1x128xf32>
    %133 = arith.addf %131, %132 : vector<1x128xf32>
    %134 = arith.mulf %45, %61 : vector<1x128xf32>
    %135 = arith.addf %133, %134 : vector<1x128xf32>
    %136 = arith.mulf %5, %65 : vector<1x128xf32>
    %137 = arith.addf %135, %136 : vector<1x128xf32>
    %138 = arith.mulf %50, %54 : vector<1x128xf32>
    %139 = arith.mulf %51, %58 : vector<1x128xf32>
    %140 = arith.addf %138, %139 : vector<1x128xf32>
    %141 = arith.mulf %45, %62 : vector<1x128xf32>
    %142 = arith.addf %140, %141 : vector<1x128xf32>
    %143 = arith.mulf %5, %66 : vector<1x128xf32>
    %144 = arith.addf %142, %143 : vector<1x128xf32>
    %145 = arith.mulf %50, %55 : vector<1x128xf32>
    %146 = arith.mulf %51, %59 : vector<1x128xf32>
    %147 = arith.addf %145, %146 : vector<1x128xf32>
    %148 = arith.mulf %45, %63 : vector<1x128xf32>
    %149 = arith.addf %147, %148 : vector<1x128xf32>
    %150 = arith.mulf %5, %67 : vector<1x128xf32>
    %151 = arith.addf %149, %150 : vector<1x128xf32>
    %152 = tpu.concatenate %74, %81, %88, %95, %102, %109, %116, %123, %130, %137, %144, %151, %64, %65, %66, %67 in 0 : vector<1x128xf32>, vector<1x128xf32>, vector<1x128xf32>, vector<1x128xf32>, vector<1x128xf32>, vector<1x128xf32>, vector<1x128xf32>, vector<1x128xf32>, vector<1x128xf32>, vector<1x128xf32>, vector<1x128xf32>, vector<1x128xf32>, vector<1x128xf32>, vector<1x128xf32>, vector<1x128xf32>, vector<1x128xf32> -> vector<16x128xf32>
    %c0_26 = arith.constant 0 : index
    %c0_27 = arith.constant 0 : index
    %153 = vector.load %arg2[%c0_26, %c0_27] : memref<16x128xf32, #tpu.memory_space<vmem>>, vector<16x128xf32>
    tpu.vector_store %arg2[%c0_26, %c0_27], %152 {strides = array<i32>} : memref<16x128xf32, #tpu.memory_space<vmem>>, vector<16x128xf32>,
    return
  }
  func.func @transform_0(%arg0: i32) -> (i32, i32) {
    %c0_i32 = arith.constant 0 : i32
    %c0_i32_0 = arith.constant 0 : i32
    return %c0_i32, %arg0 : i32, i32
  }
  func.func @transform_1(%arg0: i32) -> (i32, i32) {
    %c0_i32 = arith.constant 0 : i32
    %c0_i32_0 = arith.constant 0 : i32
    return %c0_i32, %arg0 : i32, i32
  }
}

</mosaic_0001>

<llo_original>
// kernel: tpu_custom_call.1
$region0: #{tpu_custom_call.1}
  #allocation0 [shape = 'u32[]', space=smem, size = 0x4, offset = 0x4, fixed_abs, tag = 'smem constant byte address 0x4 - core index']
  #allocation1 [shape = 'u32[72,128]{1,0:T(1,128)}', space=vmem, size = 0x9000, scoped, tag = 'internal scratch']
  %s0 = inlined_call_operand.hbm [shape: f32[22,128], index: 0, kind: input, shape index: {}]
  %s1 = inlined_call_operand.hbm [shape: f32[16,128], index: 1, kind: output, shape index: {}]
  %s2 = sld [smem:[#allocation0]]
  $region18: #{tpu_custom_call.1} parent=0
    _
  %s4 = ssub.s32 1, %s2
  %s5 = scalar_select 0, %s4, %s2
  $region1: #{tpu_custom_call.1} parent=0
    #allocation2 [shape = 'u8[12288]{0}', space=vmem, size = 0x3000, scoped, tag = 'input window, operand 0, single buffered']
    #allocation3 [shape = 's32[1]{0}', space=sflag, size = 0x4, scoped, tag = 'scoped memory for tpu_custom_call.1']
    #allocation4 [shape = 's32[1]{0}', space=sflag, size = 0x4, scoped, tag = 'scoped memory for tpu_custom_call.1']
    #allocation5 [shape = 'u8[8192]{0}', space=vmem, size = 0x2000, scoped, tag = 'output window, operand 0, single buffered']
    %6 = vsyncpa [#allocation3], 0
    %7 = vsyncpa [#allocation4], 0
    // Predicated region
    $region2: #{tpu_custom_call.1} parent=1 // pred_check
      _
    $region3: #{tpu_custom_call.1} parent=1 // pred_check_branch
      %9 = sbr.rel (0) target = $region5
    $region4: #{tpu_custom_call.1} parent=1 // pred_region
      %11 = vsyncadd [#allocation3], 0
      %s12 = sshll.u32 %s0, 4
      %s13 = int_to_ptr.hbm [resolvable:$true] %s12
      %s14 = sshll.u32 [#allocation2], 4
      %s15 = int_to_ptr.vmem [resolvable:$true] %s14
      %20 = dma.hbm_to_vmem [thread:$0]  %s13, 384, %s15, [#allocation3], 128, 128, 8
    $region5: #{tpu_custom_call.1} parent=1 // pred_fallthru
      _
    // Predicated region
    $region6: #{tpu_custom_call.1} parent=1 // pred_check
      _
    $region7: #{tpu_custom_call.1} parent=1 // pred_check_branch
      %22 = sbr.rel (0) target = $region9
    $region8: #{tpu_custom_call.1} parent=1 // pred_region
      %24 = dma.done [#allocation3], 384
    $region9: #{tpu_custom_call.1} parent=1 // pred_fallthru
      _
    %v25 = vld [vmem:[#allocation2] sm:$0x1]
    %v26 = vld [vmem:[#allocation2 + $0x1] sm:$0x1]
    %v27 = vld [vmem:[#allocation2 + $0x2] sm:$0x1]
    %v28 = vld [vmem:[#allocation2 + $0x3] sm:$0x1]
    %v29 = vld [vmem:[#allocation2 + $0x4] sm:$0x1]
    %v30 = vld [vmem:[#allocation2 + $0x5] sm:$0x1]
    %v31 = vmul.f32 %v25, %v25
    %v32 = vmul.f32 %v26, %v26
    %v33 = vadd.f32 %v31, %v32
    %v34 = vmul.f32 %v27, %v27
    %v35 = vadd.f32 %v33, %v34
    %v36 = vadd.f32 %v35, 1e-30
    %v37 = vrsqrt.pop %v36
    %v38 = vmul.f32 %v37, %v36
    %v39 = vmul.f32 %v38, %v37
    %v40 = vmul.f32 0.5, %v39
    %v41 = vsub.f32 1.5, %v40
    %v42 = vmul.f32 %v37, %v41
    %vm43 = vweird.f32 %v36
    %vm44 = vweird.f32 %v37
    %vm45 = vmor %vm43, %vm44
    %v46 = vsel %vm45, %v37, %v42
    %v47 = vmul.f32 %v35, %v46
    %v48 = vand.u32 2147483647, %v47
    %vm49 = vcmp.le.f32.partialorder %v48, 0.7853982
    %vm50 = vcmp.lt.s32.totalorder %v47, 0
    %v51 = vand.u32 %v47, 2139095040
    %v52 = vshrl.u32 %v51, 23
    %v53 = vsub.s32 %v52, 127
    %v54 = vand.u32 2147483647, %v47
    %v55 = vand.u32 %v54, 8388607
    %v56 = vor.u32 %v55, 8388608
    %v57 = vsub.s32 0, %v56
    %v58 = vadd.s32 %v53, 1
    %vm59 = vcmp.gt.s32.totalorder %v58, 0
    %v60 = vsel %vm59, %v58, 0
    %v61 = vshrl.u32 %v60, 5
    %v62 = vand.u32 %v60, 31
    %v63 = vsub.s32 32, %v62
    %v64 = vshrl.u32 683565275, %v63
    %v65 = vshll.u32 683565275, %v62
    %v66 = vshrl.u32 2475754826, %v63
    %v67 = vor.u32 %v65, %v66
    %v68 = vshll.u32 2475754826, %v62
    %v69 = vshrl.u32 2131351028, %v63
    %v70 = vor.u32 %v68, %v69
    %v71 = vshll.u32 2131351028, %v62
    %v72 = vshrl.u32 2102212464, %v63
    %v73 = vor.u32 %v71, %v72
    %v74 = vshll.u32 2102212464, %v62
    %v75 = vshrl.u32 920167782, %v63
    %v76 = vor.u32 %v74, %v75
    %v77 = vshll.u32 920167782, %v62
    %v78 = vshrl.u32 1326507024, %v63
    %v79 = vor.u32 %v77, %v78
    %vm80 = vcmp.lt.s32.totalorder %v61, 1
    %vm81 = vcmp.lt.s32.totalorder %v61, 2
    %vm82 = vcmp.lt.s32.totalorder %v61, 3
    %vm83 = vcmp.lt.s32.totalorder %v61, 4
    %v84 = vsel %vm80, %v64, %v67
    %v85 = vsel %vm83, %v73, 2102212464
    %v86 = vsel %vm82, %v70, %v85
    %v87 = vsel %vm81, %v84, %v86
    %v88 = vsel %vm80, %v67, %v70
    %v89 = vsel %vm83, %v76, 920167782
    %v90 = vsel %vm82, %v73, %v89
    %v91 = vsel %vm81, %v88, %v90
    %v92 = vsel %vm80, %v70, %v73
    %v93 = vsel %vm83, %v79, 1326507024
    %v94 = vsel %vm82, %v76, %v93
    %v95 = vsel %vm81, %v92, %v94
    %v96 = vshll.u32 %v56, 8
    %v97 = vand.u32 %v96, 65535
    %v98 = vshrl.u32 %v96, 16
    %v99 = vand.u32 %v95, 65535
    %v100 = vshrl.u32 %v95, 16
    %v101 = vmul.u32 %v97, %v99
    %v102 = vmul.u32 %v97, %v100
    %v103 = vmul.u32 %v98, %v99
    %v104 = vmul.u32 %v98, %v100
    %v105 = vshll.u32 %v102, 16
    %v106 = vshrl.u32 %v102, 16
    %v107 = vshll.u32 %v103, 16
    %v108 = vshrl.u32 %v103, 16
    %vm109 = vc.u32 %v101, %v105
    %v110 = vsel %vm109, 1, 0
    %v111 = vadd.s32 %v101, %v105
    %v112 = vadd.s32 %v104, %v110
    %vm113 = vc.u32 %v111, %v107
    %v114 = vsel %vm113, 1, 0
    %v115 = vadd.s32 %v111, %v107
    %v116 = vadd.s32 %v112, %v114
    %v117 = vadd.s32 %v116, %v106
    %v118 = vadd.s32 %v117, %v108
    %v119 = vand.u32 %v96, 65535
    %v120 = vshrl.u32 %v96, 16
    %v121 = vand.u32 %v91, 65535
    %v122 = vshrl.u32 %v91, 16
    %v123 = vmul.u32 %v119, %v121
    %v124 = vmul.u32 %v119, %v122
    %v125 = vmul.u32 %v120, %v121
    %v126 = vmul.u32 %v120, %v122
    %v127 = vshll.u32 %v124, 16
    %v128 = vshrl.u32 %v124, 16
    %v129 = vshll.u32 %v125, 16
    %v130 = vshrl.u32 %v125, 16
    %vm131 = vc.u32 %v123, %v127
    %v132 = vsel %vm131, 1, 0
    %v133 = vadd.s32 %v123, %v127
    %v134 = vadd.s32 %v126, %v132
    %vm135 = vc.u32 %v133, %v129
    %v136 = vsel %vm135, 1, 0
    %v137 = vadd.s32 %v133, %v129
    %v138 = vadd.s32 %v134, %v136
    %v139 = vadd.s32 %v138, %v128
    %v140 = vadd.s32 %v139, %v130
    %v141 = vmul.u32 %v96, %v87
    %v142 = vadd.s32 %v118, %v137
    %vm143 = vc.u32 %v118, %v137
    %v144 = vadd.s32 %v140, 1
    %v145 = vsel %vm143, %v144, %v140
    %v146 = vadd.s32 %v141, %v145
    %v147 = vadd.s32 %v146, 536870912
    %v148 = vshrl.u32 %v147, 30
    %v149 = vshll.u32 %v148, 30
    %v150 = vsub.s32 %v146, %v149
    %vm151 = vcmp.lt.s32.totalorder %v150, 0
    %v152 = vsub.s32 0, %v150
    %v153 = vsel %vm151, %v152, %v150
    %v154 = vclz %v153
    %v155 = vsub.s32 %v154, 2
    %vm156 = vcmp.gt.s32.totalorder 0, %v155
    %v157 = vsel %vm156, 0, %v155
    %v158 = vsub.s32 32, %v157
    %v159 = vshll.u32 %v150, %v157
    %v160 = vshrl.u32 %v142, %v158
    %v161 = vor.u32 %v159, %v160
    %v162 = vsub.s32 4294967266, %v157
    %v163 = vadd.s32 %v162, 127
    %v164 = vshll.u32 %v163, 23
    %v165 = vor.u32 4788187, %v164
    %v166 = vand.u32 2147483647, %v165
    %v168 = vcvt.s32.f32 %v161
    %v169 = vmul.f32 %v168, %v166
    %v170 = vxor.u32 %v169, 2147483648
    %v171 = vsel %vm50, %v170, %v169
    %v172 = vsub.s32 4, %v148
    %v173 = vsel %vm50, %v172, %v148
    %v174 = vsel %vm49, %v47, %v171
    %v175 = vsel %vm49, 0, %v173
    %v176 = vmul.f32 %v174, %v174
    %v177 = vmul.f32 %v176, -0.001358992
    %v178 = vadd.f32 %v177, 0.041655596
    %v179 = vmul.f32 %v176, %v178
    %v180 = vadd.f32 %v179, -0.4999988
    %v181 = vmul.f32 %v176, %v180
    %v182 = vadd.f32 1.0, %v181
    %v183 = vmul.f32 %v174, %v174
    %v184 = vmul.f32 %v183, -0.00019511016
    %v185 = vadd.f32 %v184, 0.008332121
    %v186 = vmul.f32 %v183, %v185
    %v187 = vadd.f32 %v186, -0.16666654
    %v188 = vmul.f32 %v183, %v187
    %v189 = vadd.f32 %v188, 1.0
    %v190 = vmul.f32 %v189, %v174
    %vm191 = vweird.f32 %v47
    %v192 = vadd.s32 %v175, 3
    %v193 = vand.u32 %v192, 3
    %vm194 = vcmp.lt.s32.totalorder %v193, 2
    %vm195 = vcmp.eq.s32.totalorder %v193, 0
    %v196 = vxor.u32 %v190, 2147483648
    %v197 = vsel %vm195, %v182, %v196
    %vm198 = vcmp.eq.s32.totalorder %v193, 2
    %v199 = vxor.u32 %v182, 2147483648
    %v200 = vsel %vm198, %v199, %v190
    %v201 = vsel %vm194, %v197, %v200
    %v202 = vsel %vm191, nan, %v201
    %v203 = vmul.f32 %v202, %v46
    %v204 = vand.u32 2147483647, %v47
    %vm205 = vcmp.le.f32.partialorder %v204, 0.7853982
    %vm206 = vcmp.lt.s32.totalorder %v47, 0
    %v207 = vand.u32 %v47, 2139095040
    %v208 = vshrl.u32 %v207, 23
    %v209 = vsub.s32 %v208, 127
    %v210 = vand.u32 2147483647, %v47
    %v211 = vand.u32 %v210, 8388607
    %v212 = vor.u32 %v211, 8388608
    %v213 = vsub.s32 0, %v212
    %v214 = vadd.s32 %v209, 1
    %vm215 = vcmp.gt.s32.totalorder %v214, 0
    %v216 = vsel %vm215, %v214, 0
    %v217 = vshrl.u32 %v216, 5
    %v218 = vand.u32 %v216, 31
    %v219 = vsub.s32 32, %v218
    %v220 = vshrl.u32 683565275, %v219
    %v221 = vshll.u32 683565275, %v218
    %v222 = vshrl.u32 2475754826, %v219
    %v223 = vor.u32 %v221, %v222
    %v224 = vshll.u32 2475754826, %v218
    %v225 = vshrl.u32 2131351028, %v219
    %v226 = vor.u32 %v224, %v225
    %v227 = vshll.u32 2131351028, %v218
    %v228 = vshrl.u32 2102212464, %v219
    %v229 = vor.u32 %v227, %v228
    %v230 = vshll.u32 2102212464, %v218
    %v231 = vshrl.u32 920167782, %v219
    %v232 = vor.u32 %v230, %v231
    %v233 = vshll.u32 920167782, %v218
    %v234 = vshrl.u32 1326507024, %v219
    %v235 = vor.u32 %v233, %v234
    %vm236 = vcmp.lt.s32.totalorder %v217, 1
    %vm237 = vcmp.lt.s32.totalorder %v217, 2
    %vm238 = vcmp.lt.s32.totalorder %v217, 3
    %vm239 = vcmp.lt.s32.totalorder %v217, 4
    %v240 = vsel %vm236, %v220, %v223
    %v241 = vsel %vm239, %v229, 2102212464
    %v242 = vsel %vm238, %v226, %v241
    %v243 = vsel %vm237, %v240, %v242
    %v244 = vsel %vm236, %v223, %v226
    %v245 = vsel %vm239, %v232, 920167782
    %v246 = vsel %vm238, %v229, %v245
    %v247 = vsel %vm237, %v244, %v246
    %v248 = vsel %vm236, %v226, %v229
    %v249 = vsel %vm239, %v235, 1326507024
    %v250 = vsel %vm238, %v232, %v249
    %v251 = vsel %vm237, %v248, %v250
    %v252 = vshll.u32 %v212, 8
    %v253 = vand.u32 %v252, 65535
    %v254 = vshrl.u32 %v252, 16
    %v255 = vand.u32 %v251, 65535
    %v256 = vshrl.u32 %v251, 16
    %v257 = vmul.u32 %v253, %v255
    %v258 = vmul.u32 %v253, %v256
    %v259 = vmul.u32 %v254, %v255
    %v260 = vmul.u32 %v254, %v256
    %v261 = vshll.u32 %v258, 16
    %v262 = vshrl.u32 %v258, 16
    %v263 = vshll.u32 %v259, 16
    %v264 = vshrl.u32 %v259, 16
    %vm265 = vc.u32 %v257, %v261
    %v266 = vsel %vm265, 1, 0
    %v267 = vadd.s32 %v257, %v261
    %v268 = vadd.s32 %v260, %v266
    %vm269 = vc.u32 %v267, %v263
    %v270 = vsel %vm269, 1, 0
    %v271 = vadd.s32 %v267, %v263
    %v272 = vadd.s32 %v268, %v270
    %v273 = vadd.s32 %v272, %v262
    %v274 = vadd.s32 %v273, %v264
    %v275 = vand.u32 %v252, 65535
    %v276 = vshrl.u32 %v252, 16
    %v277 = vand.u32 %v247, 65535
    %v278 = vshrl.u32 %v247, 16
    %v279 = vmul.u32 %v275, %v277
    %v280 = vmul.u32 %v275, %v278
    %v281 = vmul.u32 %v276, %v277
    %v282 = vmul.u32 %v276, %v278
    %v283 = vshll.u32 %v280, 16
    %v284 = vshrl.u32 %v280, 16
    %v285 = vshll.u32 %v281, 16
    %v286 = vshrl.u32 %v281, 16
    %vm287 = vc.u32 %v279, %v283
    %v288 = vsel %vm287, 1, 0
    %v289 = vadd.s32 %v279, %v283
    %v290 = vadd.s32 %v282, %v288
    %vm291 = vc.u32 %v289, %v285
    %v292 = vsel %vm291, 1, 0
    %v293 = vadd.s32 %v289, %v285
    %v294 = vadd.s32 %v290, %v292
    %v295 = vadd.s32 %v294, %v284
    %v296 = vadd.s32 %v295, %v286
    %v297 = vmul.u32 %v252, %v243
    %v298 = vadd.s32 %v274, %v293
    %vm299 = vc.u32 %v274, %v293
    %v300 = vadd.s32 %v296, 1
    %v301 = vsel %vm299, %v300, %v296
    %v302 = vadd.s32 %v297, %v301
    %v303 = vadd.s32 %v302, 536870912
    %v304 = vshrl.u32 %v303, 30
    %v305 = vshll.u32 %v304, 30
    %v306 = vsub.s32 %v302, %v305
    %vm307 = vcmp.lt.s32.totalorder %v306, 0
    %v308 = vsub.s32 0, %v306
    %v309 = vsel %vm307, %v308, %v306
    %v310 = vclz %v309
    %v311 = vsub.s32 %v310, 2
    %vm312 = vcmp.gt.s32.totalorder 0, %v311
    %v313 = vsel %vm312, 0, %v311
    %v314 = vsub.s32 32, %v313
    %v315 = vshll.u32 %v306, %v313
    %v316 = vshrl.u32 %v298, %v314
    %v317 = vor.u32 %v315, %v316
    %v318 = vsub.s32 4294967266, %v313
    %v319 = vadd.s32 %v318, 127
    %v320 = vshll.u32 %v319, 23
    %v321 = vor.u32 4788187, %v320
    %v322 = vand.u32 2147483647, %v321
    %v324 = vcvt.s32.f32 %v317
    %v325 = vmul.f32 %v324, %v322
    %v326 = vxor.u32 %v325, 2147483648
    %v327 = vsel %vm206, %v326, %v325
    %v328 = vsub.s32 4, %v304
    %v329 = vsel %vm206, %v328, %v304
    %v330 = vsel %vm205, %v47, %v327
    %v331 = vsel %vm205, 0, %v329
    %v332 = vmul.f32 %v330, %v330
    %v333 = vmul.f32 %v332, -0.001358992
    %v334 = vadd.f32 %v333, 0.041655596
    %v335 = vmul.f32 %v332, %v334
    %v336 = vadd.f32 %v335, -0.4999988
    %v337 = vmul.f32 %v332, %v336
    %v338 = vadd.f32 1.0, %v337
    %v339 = vmul.f32 %v330, %v330
    %v340 = vmul.f32 %v339, -0.00019511016
    %v341 = vadd.f32 %v340, 0.008332121
    %v342 = vmul.f32 %v339, %v341
    %v343 = vadd.f32 %v342, -0.16666654
    %v344 = vmul.f32 %v339, %v343
    %v345 = vadd.f32 %v344, 1.0
    %v346 = vmul.f32 %v345, %v330
    %vm347 = vweird.f32 %v47
    %v348 = vand.u32 %v331, 3
    %vm349 = vcmp.lt.s32.totalorder %v348, 2
    %vm350 = vcmp.eq.s32.totalorder %v348, 0
    %v351 = vxor.u32 %v346, 2147483648
    %v352 = vsel %vm350, %v338, %v351
    %vm353 = vcmp.eq.s32.totalorder %v348, 2
    %v354 = vxor.u32 %v338, 2147483648
    %v355 = vsel %vm353, %v354, %v346
    %v356 = vsel %vm349, %v352, %v355
    %v357 = vsel %vm347, nan, %v356
    %v358 = vsub.f32 1.0, %v357
    %v359 = vmul.f32 %v358, %v46
    %v360 = vmul.f32 %v359, %v46
    %v361 = vmul.f32 %v203, %v25
    %v362 = vmul.f32 %v203, %v26
    %v363 = vmul.f32 %v203, %v27
    %v364 = vmul.f32 %v360, %v25
    %v365 = vmul.f32 %v364, %v26
    %v366 = vmul.f32 %v364, %v27
    %v367 = vmul.f32 %v360, %v26
    %v368 = vmul.f32 %v367, %v27
    %v369 = vsub.f32 %v35, %v31
    %v370 = vmul.f32 %v360, %v369
    %v371 = vsub.f32 1.0, %v370
    %v372 = vsub.f32 %v35, %v32
    %v373 = vmul.f32 %v360, %v372
    %v374 = vsub.f32 1.0, %v373
    %v375 = vsub.f32 %v35, %v34
    %v376 = vmul.f32 %v360, %v375
    %v377 = vsub.f32 1.0, %v376
    %v378 = vsub.f32 %v365, %v363
    %v379 = vadd.f32 %v366, %v362
    %v380 = vadd.f32 %v365, %v363
    %v381 = vsub.f32 %v368, %v361
    %v382 = vsub.f32 %v366, %v362
    %v383 = vadd.f32 %v368, %v361
    %v384 = vld [vmem:[#allocation2 + $0x6] sm:$0x1]
    %v385 = vld [vmem:[#allocation2 + $0x7] sm:$0x1]
    %v386 = vld [vmem:[#allocation2 + $0x8] sm:$0x1]
    %v387 = vld [vmem:[#allocation2 + $0x9] sm:$0x1]
    %v388 = vld [vmem:[#allocation2 + $0xa] sm:$0x1]
    %v389 = vld [vmem:[#allocation2 + $0xb] sm:$0x1]
    %v390 = vld [vmem:[#allocation2 + $0xc] sm:$0x1]
    %v391 = vld [vmem:[#allocation2 + $0xd] sm:$0x1]
    %v392 = vld [vmem:[#allocation2 + $0xe] sm:$0x1]
    %v393 = vld [vmem:[#allocation2 + $0xf] sm:$0x1]
    %v394 = vld [vmem:[#allocation2 + $0x10] sm:$0x1]
    %v395 = vld [vmem:[#allocation2 + $0x11] sm:$0x1]
    %v396 = vld [vmem:[#allocation2 + $0x12] sm:$0x1]
    %v397 = vld [vmem:[#allocation2 + $0x13] sm:$0x1]
    %v398 = vld [vmem:[#allocation2 + $0x14] sm:$0x1]
    %v399 = vld [vmem:[#allocation2 + $0x15] sm:$0x1]
    %v400 = vmul.f32 %v371, %v384
    %v401 = vmul.f32 %v378, %v388
    %v402 = vadd.f32 %v400, %v401
    %v403 = vmul.f32 %v379, %v392
    %v404 = vadd.f32 %v402, %v403
    %v405 = vmul.f32 %v28, %v396
    %v406 = vadd.f32 %v404, %v405
    %v407 = vmul.f32 %v371, %v385
    %v408 = vmul.f32 %v378, %v389
    %v409 = vadd.f32 %v407, %v408
    %v410 = vmul.f32 %v379, %v393
    %v411 = vadd.f32 %v409, %v410
    %v412 = vmul.f32 %v28, %v397
    %v413 = vadd.f32 %v411, %v412
    %v414 = vmul.f32 %v371, %v386
    %v415 = vmul.f32 %v378, %v390
    %v416 = vadd.f32 %v414, %v415
    %v417 = vmul.f32 %v379, %v394
    %v418 = vadd.f32 %v416, %v417
    %v419 = vmul.f32 %v28, %v398
    %v420 = vadd.f32 %v418, %v419
    %v421 = vmul.f32 %v371, %v387
    %v422 = vmul.f32 %v378, %v391
    %v423 = vadd.f32 %v421, %v422
    %v424 = vmul.f32 %v379, %v395
    %v425 = vadd.f32 %v423, %v424
    %v426 = vmul.f32 %v28, %v399
    %v427 = vadd.f32 %v425, %v426
    %v428 = vmul.f32 %v380, %v384
    %v429 = vmul.f32 %v374, %v388
    %v430 = vadd.f32 %v428, %v429
    %v431 = vmul.f32 %v381, %v392
    %v432 = vadd.f32 %v430, %v431
    %v433 = vmul.f32 %v29, %v396
    %v434 = vadd.f32 %v432, %v433
    %v435 = vmul.f32 %v380, %v385
    %v436 = vmul.f32 %v374, %v389
    %v437 = vadd.f32 %v435, %v436
    %v438 = vmul.f32 %v381, %v393
    %v439 = vadd.f32 %v437, %v438
    %v440 = vmul.f32 %v29, %v397
    %v441 = vadd.f32 %v439, %v440
    %v442 = vmul.f32 %v380, %v386
    %v443 = vmul.f32 %v374, %v390
    %v444 = vadd.f32 %v442, %v443
    %v445 = vmul.f32 %v381, %v394
    %v446 = vadd.f32 %v444, %v445
    %v447 = vmul.f32 %v29, %v398
    %v448 = vadd.f32 %v446, %v447
    %v449 = vmul.f32 %v380, %v387
    %v450 = vmul.f32 %v374, %v391
    %v451 = vadd.f32 %v449, %v450
    %v452 = vmul.f32 %v381, %v395
    %v453 = vadd.f32 %v451, %v452
    %v454 = vmul.f32 %v29, %v399
    %v455 = vadd.f32 %v453, %v454
    %v456 = vmul.f32 %v382, %v384
    %v457 = vmul.f32 %v383, %v388
    %v458 = vadd.f32 %v456, %v457
    %v459 = vmul.f32 %v377, %v392
    %v460 = vadd.f32 %v458, %v459
    %v461 = vmul.f32 %v30, %v396
    %v462 = vadd.f32 %v460, %v461
    %v463 = vmul.f32 %v382, %v385
    %v464 = vmul.f32 %v383, %v389
    %v465 = vadd.f32 %v463, %v464
    %v466 = vmul.f32 %v377, %v393
    %v467 = vadd.f32 %v465, %v466
    %v468 = vmul.f32 %v30, %v397
    %v469 = vadd.f32 %v467, %v468
    %v470 = vmul.f32 %v382, %v386
    %v471 = vmul.f32 %v383, %v390
    %v472 = vadd.f32 %v470, %v471
    %v473 = vmul.f32 %v377, %v394
    %v474 = vadd.f32 %v472, %v473
    %v475 = vmul.f32 %v30, %v398
    %v476 = vadd.f32 %v474, %v475
    %v477 = vmul.f32 %v382, %v387
    %v478 = vmul.f32 %v383, %v391
    %v479 = vadd.f32 %v477, %v478
    %v480 = vmul.f32 %v377, %v395
    %v481 = vadd.f32 %v479, %v480
    %v482 = vmul.f32 %v30, %v399
    %v483 = vadd.f32 %v481, %v482
    %v485 = vrot.slane %v413, 7
    %v488 = vrot.slane %v420, 6
    %v491 = vrot.slane %v427, 5
    %v494 = vrot.slane %v434, 4
    %v497 = vrot.slane %v441, 3
    %v500 = vrot.slane %v448, 2
    %v503 = vrot.slane %v455, 1
    %v506 = vrot.slane %v469, 7
    %v509 = vrot.slane %v476, 6
    %v512 = vrot.slane %v483, 5
    %v515 = vrot.slane %v396, 4
    %v518 = vrot.slane %v397, 3
    %v521 = vrot.slane %v398, 2
    %v524 = vrot.slane %v399, 1
    %vm526 = vcmask 1040384
    %v527 = vsel %vm526, %v406, %v485
    %vm528 = vcmask 1041408
    %v529 = vsel %vm528, %v527, %v488
    %vm530 = vcmask 1042432
    %v531 = vsel %vm530, %v529, %v491
    %vm532 = vcmask 1043456
    %v533 = vsel %vm532, %v531, %v494
    %vm534 = vcmask 1044480
    %v535 = vsel %vm534, %v533, %v497
    %vm536 = vcmask 1045504
    %v537 = vsel %vm536, %v535, %v500
    %vm538 = vcmask 1046528
    %v539 = vsel %vm538, %v537, %v503
    %v540 = vsel %vm526, %v462, %v506
    %v541 = vsel %vm528, %v540, %v509
    %v542 = vsel %vm530, %v541, %v512
    %v543 = vsel %vm532, %v542, %v515
    %v544 = vsel %vm534, %v543, %v518
    %v545 = vsel %vm536, %v544, %v521
    %v546 = vsel %vm538, %v545, %v524
    %547 = vst [vmem:[#allocation5] sm:$0xff] %v539
    %548 = vst [vmem:[#allocation5 + $0x8] sm:$0xff] %v546
    // Predicated region
    $region10: #{tpu_custom_call.1} parent=1 // pred_check
      _
    $region11: #{tpu_custom_call.1} parent=1 // pred_check_branch
      %550 = sbr.rel (0) target = $region13
    $region12: #{tpu_custom_call.1} parent=1 // pred_region
      %552 = vsyncadd [#allocation4], 0
      %s553 = sshll.u32 [#allocation5], 4
      %s554 = int_to_ptr.vmem [resolvable:$true] %s553
      %s555 = sshll.u32 %s1, 4
      %s556 = int_to_ptr.hbm [resolvable:$true] %s555
      %561 = dma.vmem_to_hbm [thread:$0]  %s554, 256, %s556, [#allocation4], 128, 128, 8
    $region13: #{tpu_custom_call.1} parent=1 // pred_fallthru
      _
    // Predicated region
    $region14: #{tpu_custom_call.1} parent=1 // pred_check
      _
    $region15: #{tpu_custom_call.1} parent=1 // pred_check_branch
      %563 = sbr.rel (0) target = $region17
    $region16: #{tpu_custom_call.1} parent=1 // pred_region
      %565 = dma.done [#allocation4], 256
    $region17: #{tpu_custom_call.1} parent=1 // pred_fallthru
      _
    %566 = vsyncpa [#allocation3], 1
    %567 = vsyncpa [#allocation4], 1

</llo_original>
